<compile_context>
chip_gen: v5e
topology: v5e:2x2
jax: 0.10.0
libtpu: 0.0.40
codegen_flags: <defaults>
</compile_context>

<pallas_src>
import jax
import jax.numpy as jnp
from jax.experimental import pallas as pl
from jax.experimental.pallas import tpu as pltpu


def integrator_kernel(x_ref, w_ref, b_ref, out_ref):
    # x_ref  : (TB, Cin, TH)   bf16 input tile (lanes = spatial)
    # w_ref  : (Cout, Cin)     bf16 1x1-conv weight (VMEM resident)
    # b_ref  : (Cout, 1)       f32 bias
    # out_ref: (TB, Cout, TH)
    w = w_ref[...]
    bias = b_ref[...].astype(jnp.float32)
    tb = x_ref.shape[0]
    for b in range(tb):  # static, small unroll: one clean MXU matmul per batch elem
        acc = jnp.dot(w, x_ref[b], preferred_element_type=jnp.float32)  # (Cout, TH)
        out_ref[b] = (acc + bias).astype(out_ref.dtype)


def _pick_tiles(B, Cin, Cout, HW_pad, itemsize,
                budget_bytes=16 << 20, step_target_bytes=4 << 20):
    """Pick (TB, TH): TH a multiple of 128 dividing HW_pad, TB a divisor of B.

    Keeps the double-buffered x+out working set <= budget_bytes (v7x 64 MiB
    VMEM safe) and blocks batch elements together when the per-step DMA would
    otherwise be tiny (amortizes the ~0.35 us grid-step overhead)."""
    per_col = 2 * (Cin + Cout) * itemsize          # double-buffered bytes per lane column
    max_th = max(128, (budget_bytes // per_col) // 128 * 128)
    th = min(HW_pad, max_th)
    while HW_pad % th != 0:
        th -= 128

    tb = 1
    if th == HW_pad:                               # small spatial extent -> batch-block
        step_bytes = per_col * th                  # per batch element, double-buffered
        max_tb = max(1, int(step_target_bytes // max(step_bytes, 1)))
        for d in range(1, B + 1):
            if B % d == 0 and d <= max_tb:
                tb = d                             # largest admissible divisor of B

    # v7x megacore: make sure the grid has >= 2 programs whenever possible.
    if (B // tb) * (HW_pad // th) < 2:
        if tb > 1:
            for d in range(tb - 1, 0, -1):
                if B % d == 0 and B // d >= 2:
                    tb = d
                    break
        elif HW_pad > 128:
            for cand in range(HW_pad - 128, 0, -128):
                if HW_pad % cand == 0:
                    th = cand
                    break
    return tb, th


def integrator(comps, weight, bias, *, compute_dtype=jnp.bfloat16, tiles=None):
    """comps: (B, n_comps, C, H, W) -> (B, Cout, H, W): flatten(1,2) + 1x1 conv.

    HBM-bandwidth-bound: inputs/weight/output moved as bf16, f32 accumulation."""
    B, n_comps, C, H, W = comps.shape
    Cin = n_comps * C
    Cout = weight.shape[0]
    HW = H * W

    x = comps.reshape(B, Cin, HW).astype(compute_dtype)
    w = weight.reshape(Cout, Cin).astype(compute_dtype)
    b2 = bias.reshape(Cout, 1).astype(jnp.float32)

    # Lane-dense spatial axis: pad HW up to a multiple of 128 (sliced off below).
    HW_pad = ((HW + 127) // 128) * 128
    if HW_pad != HW:
        x = jnp.pad(x, ((0, 0), (0, 0), (0, HW_pad - HW)))

    itemsize = jnp.dtype(compute_dtype).itemsize
    if tiles is None:
        TB, TH = _pick_tiles(B, Cin, Cout, HW_pad, itemsize)
    else:
        TB, TH = tiles
    assert B % TB == 0 and HW_pad % TH == 0

    grid = (B // TB, HW_pad // TH)

    cost = pl.CostEstimate(
        flops=2 * B * Cout * Cin * HW_pad,
        transcendentals=0,
        bytes_accessed=itemsize * (B * Cin * HW_pad + B * Cout * HW_pad + Cout * Cin)
        + 4 * Cout,
    )

    out = pl.pallas_call(
        integrator_kernel,
        out_shape=jax.ShapeDtypeStruct((B, Cout, HW_pad), compute_dtype),
        grid_spec=pltpu.PrefetchScalarGridSpec(
            num_scalar_prefetch=0,
            grid=grid,
            in_specs=[
                pl.BlockSpec((TB, Cin, TH), lambda b, s: (b, 0, s)),   # x tile
                pl.BlockSpec((Cout, Cin), lambda b, s: (0, 0)),        # weight (resident)
                pl.BlockSpec((Cout, 1), lambda b, s: (0, 0)),          # bias (resident)
            ],
            out_specs=pl.BlockSpec((TB, Cout, TH), lambda b, s: (b, 0, s)),
        ),
        compiler_params=pltpu.CompilerParams(
            dimension_semantics=("parallel", "parallel"),
            vmem_limit_bytes=32 << 20,
        ),
        cost_estimate=cost,
    )(x, w, b2)

    out = out[:, :, :HW]
    return out.reshape(B, Cout, H, W)


def integrator_ref(comps, weight, bias):
    """Pure-JAX f32 reference: flatten components + 1x1 conv (matches PyTorch)."""
    B, n_comps, C, H, W = comps.shape
    Cout = weight.shape[0]
    x = comps.reshape(B, n_comps * C, H * W)
    out = jnp.einsum('oc,bci->boi', weight.reshape(Cout, -1), x) + bias.reshape(1, -1, 1)
    return out.reshape(B, Cout, H, W)


if __name__ == "__main__":
    key = jax.random.PRNGKey(0)
    kx, kw, kb = jax.random.split(key, 3)

    # Integrator(C=32, n_comps=3): comps (B, n_comps, C, H, W), Cin = 96
    B, n_comps, C, H, W = 2, 3, 32, 16, 16
    Cin = n_comps * C

    comps = jax.random.normal(kx, (B, n_comps, C, H, W), jnp.float32)
    # Conv2d(Cin, C, 1): torch weight (C, Cin, 1, 1) flattened to (C, Cin); bias (C,)
    weight = (1.0 / jnp.sqrt(Cin)) * jax.random.normal(kw, (C, Cin), jnp.float32)
    bias = 0.1 * jax.random.normal(kb, (C,), jnp.float32)

    out = integrator(comps, weight, bias)
    out = jax.block_until_ready(out)

    ref = integrator_ref(comps, weight, bias)
    assert out.shape == (B, C, H, W)
    err = jnp.max(jnp.abs(out.astype(jnp.float32) - ref))
    # bf16 inputs + f32 accumulation: loosened tolerance vs the f32 reference.
    assert err < 5e-2, f"mismatch vs reference: max abs err {err}"

    print("KERNEL_OK")
</pallas_src>

<mosaic_0001>
module attributes {stable_mosaic.version = 11 : i64} {
  func.func @integrator_kernel(%arg0: i32, %arg1: i32, %arg2: memref<1x96x256xbf16, #tpu.memory_space<vmem>>, %arg3: memref<32x96xbf16, #tpu.memory_space<vmem>>, %arg4: memref<32x1xf32, #tpu.memory_space<vmem>>, %arg5: memref<1x32x256xbf16, #tpu.memory_space<vmem>>) attributes {dimension_semantics = [#tpu.dimension_semantics<parallel>, #tpu.dimension_semantics<parallel>], iteration_bounds = array<i64: 2, 1>, scalar_prefetch = 0 : i64, scratch_operands = 0 : i64, tpu.core_type = #tpu.core_type<tc>, window_params = [{transform_indices = @transform_0, window_bounds = array<i64: 1, 96, 256>}, {pipeline_mode = #tpu.pipeline_mode<synchronous>, transform_indices = @transform_1, window_bounds = array<i64: 32, 96>}, {pipeline_mode = #tpu.pipeline_mode<synchronous>, transform_indices = @transform_2, window_bounds = array<i64: 32, 1>}, {transform_indices = @transform_3, window_bounds = array<i64: 1, 32, 256>}]} {
    %c0 = arith.constant 0 : index
    %c0_0 = arith.constant 0 : index
    %0 = vector.load %arg3[%c0, %c0_0] : memref<32x96xbf16, #tpu.memory_space<vmem>>, vector<32x96xbf16>
    %c0_1 = arith.constant 0 : index
    %c0_2 = arith.constant 0 : index
    %1 = vector.load %arg4[%c0_1, %c0_2] : memref<32x1xf32, #tpu.memory_space<vmem>>, vector<32x1xf32>
    %c0_3 = arith.constant 0 : index
    %c0_4 = arith.constant 0 : index
    %c0_5 = arith.constant 0 : index
    %2 = vector.load %arg2[%c0_3, %c0_4, %c0_5] : memref<1x96x256xbf16, #tpu.memory_space<vmem>>, vector<1x96x256xbf16>
    %3 = vector.shape_cast %2 : vector<1x96x256xbf16> to vector<96x256xbf16>
    %cst = arith.constant dense<0.000000e+00> : vector<32x256xf32>
    %4 = tpu.matmul %0, %3, %cst {dimension_numbers = #tpu.dot_dimension_numbers<[1], [0], [0], [1], [0, 0, 1, 1], [], []>} : vector<32x96xbf16>, vector<96x256xbf16>, vector<32x256xf32> -> vector<32x256xf32>
    %5 = vector.broadcast %1 : vector<32x1xf32> to vector<32x256xf32>
    %6 = arith.addf %4, %5 : vector<32x256xf32>
    %7 = arith.truncf %6 : vector<32x256xf32> to vector<32x256xbf16>
    %c0_6 = arith.constant 0 : index
    %c0_7 = arith.constant 0 : index
    %c0_8 = arith.constant 0 : index
    %8 = vector.load %arg5[%c0_6, %c0_7, %c0_8] : memref<1x32x256xbf16, #tpu.memory_space<vmem>>, vector<1x32x256xbf16>
    %9 = vector.shape_cast %8 : vector<1x32x256xbf16> to vector<32x256xbf16>
    %10 = vector.shape_cast %7 : vector<32x256xbf16> to vector<1x32x256xbf16>
    tpu.vector_store %arg5[%c0_6, %c0_7, %c0_8], %10 {strides = array<i32>} : memref<1x32x256xbf16, #tpu.memory_space<vmem>>, vector<1x32x256xbf16>,
    return
  }
  func.func @transform_0(%arg0: i32, %arg1: i32) -> (i32, i32, i32) {
    %c0_i32 = arith.constant 0 : i32
    %c0_i32_0 = arith.constant 0 : i32
    return %arg0, %c0_i32, %arg1 : i32, i32, i32
  }
  func.func @transform_1(%arg0: i32, %arg1: i32) -> (i32, i32) {
    %c0_i32 = arith.constant 0 : i32
    %c0_i32_0 = arith.constant 0 : i32
    %c0_i32_1 = arith.constant 0 : i32
    return %c0_i32, %c0_i32_0 : i32, i32
  }
  func.func @transform_2(%arg0: i32, %arg1: i32) -> (i32, i32) {
    %c0_i32 = arith.constant 0 : i32
    %c0_i32_0 = arith.constant 0 : i32
    %c0_i32_1 = arith.constant 0 : i32
    return %c0_i32, %c0_i32_0 : i32, i32
  }
  func.func @transform_3(%arg0: i32, %arg1: i32) -> (i32, i32, i32) {
    %c0_i32 = arith.constant 0 : i32
    %c0_i32_0 = arith.constant 0 : i32
    return %arg0, %c0_i32, %arg1 : i32, i32, i32
  }
}

</mosaic_0001>

<llo_original>
// kernel: tpu_custom_call.1
$region0: #{tpu_custom_call.1}
  #allocation0 [shape = 'u32[]', space=smem, size = 0x4, offset = 0x4, fixed_abs, tag = 'smem constant byte address 0x4 - core index']
  #allocation1 [shape = 'u32[72,128]{1,0:T(1,128)}', space=vmem, size = 0x9000, scoped, tag = 'internal scratch']
  %s0 = inlined_call_operand.hbm [shape: bf16[2,96,256], index: 0, kind: input, shape index: {}]
  %s1 = inlined_call_operand.vmem [shape: bf16[32,96], index: 1, kind: input, shape index: {}]
  %s2 = inlined_call_operand.vmem [shape: f32[32,1], index: 2, kind: input, shape index: {}]
  %s3 = inlined_call_operand.hbm [shape: bf16[2,32,256], index: 3, kind: output, shape index: {}]
  %s4 = sld [smem:[#allocation0]]
  $region49: #{tpu_custom_call.1} parent=0
    _
  %s6 = ssub.s32 1, %s4
  %s7 = scalar_select 0, %s6, %s4
  $region1: #{tpu_custom_call.1} parent=0
    #allocation2 [shape = 'u8[98304]{0}', space=vmem, size = 0x18000, scoped, tag = 'input window, operand 0']
    #allocation3 [shape = 's32[2]{0}', space=sflag, size = 0x8, scoped, tag = 'scoped memory for tpu_custom_call.1']
    #allocation4 [shape = 's32[2]{0}', space=sflag, size = 0x8, scoped, tag = 'scoped memory for tpu_custom_call.1']
    #allocation5 [shape = 'u8[32768]{0}', space=vmem, size = 0x8000, scoped, tag = 'output window, operand 0']
    %8 = vsyncpa [#allocation3], 0
    %s9 = scalar_lea.sflag [#allocation3], 1
    %10 = vsyncpa %s9, 0
    %11 = vsyncpa [#allocation4], 0
    %s12 = scalar_lea.sflag [#allocation4], 1
    %13 = vsyncpa %s12, 0
    loop: start=0, step=1, limit=4
    $region2: #{tpu_custom_call.1} parent=1 // loop_pre_header
      _
    $region3: #{tpu_custom_call.1} parent=1 // loop_header
      %s15 = sphi 0, %s19
      %p16 = scmp.ge.s32.totalorder %s15, 4
      %s22 = sphi 0, %s34
      %s23 = sphi 0, %s30
      %s24 = sphi 0, %s22
      %s25 = sphi 0, %s23
      %s26 = sphi 0, %s24
      %s27 = sphi 0, %s25
      %s39 = sphi 0, %s41
      %s42 = sphi 0, %s39
      %s43 = sphi 0, %s42
      %s59 = sphi 0, %s43
      %s63 = sphi 0, %s63
      %s65 = sphi 0, %s63
      %s66 = sphi 0, %s65
      %s80 = sphi 0, %s66
      %s84 = sphi 0, %s84
      %s86 = sphi 0, %s84
      %s87 = sphi 0, %s86
      %s101 = sphi 0, %s87
      %s109 = sphi 0, %s111
      %s112 = sphi 0, %s109
      %s113 = sphi 0, %s112
      %s129 = sphi 0, %s113
    $region4: #{tpu_custom_call.1} parent=1 // loop_header_branch
      %18 = sbr.rel (%p16) target = $region8
    $region5: #{tpu_custom_call.1} parent=1 // loop_body
      %s20 = ssub.s32 %s15, 1
      %s21 = ssub.s32 %s15, 2
      %s28 = sadd.s32 1, %s23
      %p29 = scmp.ge.s32.totalorder %s28, 1
      %s30 = scalar_select %p29, 0, %s28
      %s31 = sadd.s32 1, %s22
      %s32 = scalar_select %p29, %s31, %s22
      %p33 = scmp.ge.s32.totalorder %s32, 2
      %s34 = scalar_select %p33, 0, %s32
      %s35 = ssub.s32 %s22, %s34
      %s36 = ssub.s32 %s23, %s30
      %s37 = sor.u32 %s35, %s36
      %p38 = scmp.eq.s32.totalorder %s37, 0
      %s40 = sadd.s32 %s39, 1
      %s41 = scalar_select %p38, %s39, %s40
      %p44 = pneg %p38
      %p45 = scmp.eq.s32.totalorder %s15, 1
      %p46 = por %p44, %p45
      %p47 = scmp.ne.s32.totalorder %s39, %s42
      %p48 = scmp.eq.s32.totalorder %s15, 0
      %p49 = por %p47, %p48
      %p50 = scmp.ne.s32.totalorder %s39, %s42
      %p51 = scmp.eq.s32.totalorder %s20, 1
      %p52 = por %p50, %p51
      %p53 = scmp.ne.s32.totalorder %s42, %s43
      %p54 = scmp.eq.s32.totalorder %s20, 0
      %p55 = por %p53, %p54
      %p56 = scmp.ne.s32.totalorder %s42, %s43
      %p57 = scmp.eq.s32.totalorder %s21, 1
      %p58 = por %p56, %p57
      %p60 = scmp.ne.s32.totalorder %s43, %s59
      %p61 = scmp.eq.s32.totalorder %s21, 0
      %p62 = por %p60, %p61
      %s64 = sadd.s32 %s63, 1
      %p67 = scmp.eq.s32.totalorder %s15, 1
      %p68 = scmp.ne.s32.totalorder %s63, %s65
      %p69 = scmp.eq.s32.totalorder %s15, 0
      %p70 = por %p68, %p69
      %p71 = scmp.ne.s32.totalorder %s63, %s65
      %p72 = scmp.eq.s32.totalorder %s20, 1
      %p73 = por %p71, %p72
      %p74 = scmp.ne.s32.totalorder %s65, %s66
      %p75 = scmp.eq.s32.totalorder %s20, 0
      %p76 = por %p74, %p75
      %p77 = scmp.ne.s32.totalorder %s65, %s66
      %p78 = scmp.eq.s32.totalorder %s21, 1
      %p79 = por %p77, %p78
      %p81 = scmp.ne.s32.totalorder %s66, %s80
      %p82 = scmp.eq.s32.totalorder %s21, 0
      %p83 = por %p81, %p82
      %s85 = sadd.s32 %s84, 1
      %p88 = scmp.eq.s32.totalorder %s15, 1
      %p89 = scmp.ne.s32.totalorder %s84, %s86
      %p90 = scmp.eq.s32.totalorder %s15, 0
      %p91 = por %p89, %p90
      %p92 = scmp.ne.s32.totalorder %s84, %s86
      %p93 = scmp.eq.s32.totalorder %s20, 1
      %p94 = por %p92, %p93
      %p95 = scmp.ne.s32.totalorder %s86, %s87
      %p96 = scmp.eq.s32.totalorder %s20, 0
      %p97 = por %p95, %p96
      %p98 = scmp.ne.s32.totalorder %s86, %s87
      %p99 = scmp.eq.s32.totalorder %s21, 1
      %p100 = por %p98, %p99
      %p102 = scmp.ne.s32.totalorder %s87, %s101
      %p103 = scmp.eq.s32.totalorder %s21, 0
      %p104 = por %p102, %p103
      %s105 = ssub.s32 %s22, %s34
      %s106 = ssub.s32 %s23, %s30
      %s107 = sor.u32 %s105, %s106
      %p108 = scmp.eq.s32.totalorder %s107, 0
      %s110 = sadd.s32 %s109, 1
      %s111 = scalar_select %p108, %s109, %s110
      %p114 = pneg %p108
      %p115 = scmp.eq.s32.totalorder %s15, 1
      %p116 = por %p114, %p115
      %p117 = scmp.ne.s32.totalorder %s109, %s112
      %p118 = scmp.eq.s32.totalorder %s15, 0
      %p119 = por %p117, %p118
      %p120 = scmp.ne.s32.totalorder %s109, %s112
      %p121 = scmp.eq.s32.totalorder %s20, 1
      %p122 = por %p120, %p121
      %p123 = scmp.ne.s32.totalorder %s112, %s113
      %p124 = scmp.eq.s32.totalorder %s20, 0
      %p125 = por %p123, %p124
      %p126 = scmp.ne.s32.totalorder %s112, %s113
      %p127 = scmp.eq.s32.totalorder %s21, 1
      %p128 = por %p126, %p127
      %p130 = scmp.ne.s32.totalorder %s113, %s129
      %p131 = scmp.eq.s32.totalorder %s21, 0
      %p132 = por %p130, %p131
      %p133 = scmp.le.s32.totalorder 1, %s15
      %p134 = scmp.lt.s32.totalorder %s15, 3
      %p135 = pnand %p133, %p134
      %p136 = pneg %p135
      // Predicated region
      $region9: #{tpu_custom_call.1} parent=5 // pred_check
        _
      $region10: #{tpu_custom_call.1} parent=5 // pred_check_branch
        %138 = sbr.rel (%p135) target = $region12
      $region11: #{tpu_custom_call.1} parent=5 // pred_region
        %s139 = ssub.s32 %s15, 1
        // Predicated region
        $region13: #{tpu_custom_call.1} parent=11 // pred_check
          %p140 = pneg %p76
        $region14: #{tpu_custom_call.1} parent=11 // pred_check_branch
          %142 = sbr.rel (%p140) target = $region16
        $region15: #{tpu_custom_call.1} parent=11 // pred_region
          _
        $region16: #{tpu_custom_call.1} parent=11 // pred_fallthru
          _
        // Predicated region
        $region17: #{tpu_custom_call.1} parent=11 // pred_check
          %p143 = pneg %p97
        $region18: #{tpu_custom_call.1} parent=11 // pred_check_branch
          %145 = sbr.rel (%p143) target = $region20
        $region19: #{tpu_custom_call.1} parent=11 // pred_region
          _
        $region20: #{tpu_custom_call.1} parent=11 // pred_fallthru
          _
      $region12: #{tpu_custom_call.1} parent=5 // pred_fallthru
        _
      %p146 = scmp.lt.s32.totalorder %s15, 2
      // Predicated region
      $region21: #{tpu_custom_call.1} parent=5 // pred_check
        %p147 = pneg %p146
      $region22: #{tpu_custom_call.1} parent=5 // pred_check_branch
        %149 = sbr.rel (%p147) target = $region24
      $region23: #{tpu_custom_call.1} parent=5 // pred_region
        // Predicated region
        $region25: #{tpu_custom_call.1} parent=23 // pred_check
          %p150 = pneg %p49
        $region26: #{tpu_custom_call.1} parent=23 // pred_check_branch
          %152 = sbr.rel (%p150) target = $region28
        $region27: #{tpu_custom_call.1} parent=23 // pred_region
          %s153 = sand.u32 %s39, 1
          %s154 = scalar_lea.sflag [#allocation3], %s153
          %s155 = sand.u32 %s39, 1
          %s156 = smul.addr %s155, 96
          %s157 = scalar_lea.vmem [#allocation2], %s156
          %s158 = smul.u32 2, %s23
          %160 = vsyncadd %s154, 0
          %s161 = smul.addr %s22, 24
          %s162 = sadd.s32 %s158, %s161
          %s163 = smul.addr %s162, 4
          %s164 = scalar_lea.hbm %s0, %s163
          %s165 = sshll.u32 %s164, 4
          %s166 = int_to_ptr.hbm [resolvable:$true] %s165
          %s167 = sshll.u32 %s157, 4
          %s168 = int_to_ptr.vmem [resolvable:$true] %s167
          %173 = dma.hbm_to_vmem [thread:$0]  %s166, 1536, %s168, %s154, 128, 128, 8
        $region28: #{tpu_custom_call.1} parent=23 // pred_fallthru
          _
      $region24: #{tpu_custom_call.1} parent=5 // pred_fallthru
        _
      %p174 = scmp.le.s32.totalorder 1, %s15
      %p175 = scmp.lt.s32.totalorder %s15, 3
      %p176 = pnand %p174, %p175
      %p177 = pneg %p176
      // Predicated region
      $region29: #{tpu_custom_call.1} parent=5 // pred_check
        _
      $region30: #{tpu_custom_call.1} parent=5 // pred_check_branch
        %179 = sbr.rel (%p176) target = $region32
      $region31: #{tpu_custom_call.1} parent=5 // pred_region
        %s180 = ssub.s32 %s15, 1
        %s181 = sand.u32 %s42, 1
        %s182 = scalar_lea.sflag [#allocation3], %s181
        %s183 = sand.u32 %s42, 1
        %s184 = smul.addr %s183, 96
        %s185 = scalar_lea.vmem [#allocation2], %s184
        // Predicated region
        $region33: #{tpu_custom_call.1} parent=31 // pred_check
          %p186 = pneg %p55
        $region34: #{tpu_custom_call.1} parent=31 // pred_check_branch
          %188 = sbr.rel (%p186) target = $region36
        $region35: #{tpu_custom_call.1} parent=31 // pred_region
          %190 = dma.done %s182, 1536
        $region36: #{tpu_custom_call.1} parent=31 // pred_fallthru
          _
        %s191 = sand.u32 %s42, 1
        %s192 = scalar_lea.sflag [#allocation3], %s191
        %s193 = sand.u32 %s42, 1
        %s194 = smul.addr %s193, 96
        %s195 = scalar_lea.vmem [#allocation2], %s194
        %p196 = pneg %p55
        %p197 = pneg %p52
        %p198 = pneg %p76
        %p199 = pneg %p73
        %p200 = pneg %p97
        %p201 = pneg %p94
        %p202 = pneg %p125
        %p203 = pneg %p122
        %s204 = sand.u32 %s112, 1
        %s205 = scalar_lea.sflag [#allocation4], %s204
        %s206 = sand.u32 %s112, 1
        %s207 = smul.addr %s206, 32
        %s208 = scalar_lea.vmem [#allocation5], %s207
        %s209 = smul.u32 2, %s25
        %s210 = smul.u32 2, %s25
        %v212 = vld [vmem:[%s1] sm:$0xf]
        %v213 = vld [vmem:[%s1 + $0x4] sm:$0xf]
        %v214 = vld [vmem:[%s1 + $0x8] sm:$0xf]
        %v215 = vld [vmem:[%s1 + $0xc] sm:$0xf]
        %v216 = vld [vmem:[%s2] sm:$0xff]
        %v217 = vld [vmem:[%s2 + $0x8] sm:$0xff]
        %v218 = vld [vmem:[%s2 + $0x10] sm:$0xff]
        %v219 = vld [vmem:[%s2 + $0x18] sm:$0xff]
        %v220 = vld [vmem:[%s185] sm:$0xff]
        %v221 = vld [vmem:[%s185 + $0x8] sm:$0xff]
        %v222 = vld [vmem:[%s185 + $0x10] sm:$0xff]
        %v223 = vld [vmem:[%s185 + $0x18] sm:$0xff]
        %v224 = vld [vmem:[%s185 + $0x20] sm:$0xff]
        %v225 = vld [vmem:[%s185 + $0x28] sm:$0xff]
        %v226 = vld [vmem:[%s185 + $0x30] sm:$0xff]
        %v227 = vld [vmem:[%s185 + $0x38] sm:$0xff]
        %v228 = vld [vmem:[%s185 + $0x40] sm:$0xff]
        %v229 = vld [vmem:[%s185 + $0x48] sm:$0xff]
        %v230 = vld [vmem:[%s185 + $0x50] sm:$0xff]
        %v231 = vld [vmem:[%s185 + $0x58] sm:$0xff]
        %233 = vset.pattern.permute.xlu0 0
        %234 = vperm.xlu0 %233, %v216
        %v235 = vpop.permute.xlu0 %234
        %238 = vset.pattern.permute.xlu0 0
        %239 = vperm.xlu0 %238, %v217
        %v240 = vpop.permute.xlu0 %239
        %243 = vset.pattern.permute.xlu0 0
        %244 = vperm.xlu0 %243, %v218
        %v245 = vpop.permute.xlu0 %244
        %248 = vset.pattern.permute.xlu0 0
        %249 = vperm.xlu0 %248, %v219
        %v250 = vpop.permute.xlu0 %249
        %v256 = vunpack.c.l.b16 %v212
        %v257 = vunpack.c.l.b16 %v213
        %v258 = vunpack.c.l.b16 %v214
        %v259 = vunpack.c.l.b16 %v215
        %v260 = vpack.c.b16 %v257, %v256
        %v261 = vpack.c.b16 %v259, %v258
        %v274 = vunpack.c.l.b16 %v220
        %v275 = vunpack.c.h.b16 %v220
        %v276 = vunpack.c.l.b16 %v221
        %v277 = vunpack.c.h.b16 %v221
        %v278 = vunpack.c.l.b16 %v222
        %v279 = vunpack.c.h.b16 %v222
        %v280 = vunpack.c.l.b16 %v223
        %v281 = vunpack.c.h.b16 %v223
        %v282 = vunpack.c.l.b16 %v224
        %v283 = vunpack.c.h.b16 %v224
        %v284 = vunpack.c.l.b16 %v225
        %v285 = vunpack.c.h.b16 %v225
        %v286 = vunpack.c.l.b16 %v226
        %v287 = vunpack.c.h.b16 %v226
        %v288 = vunpack.c.l.b16 %v227
        %v289 = vunpack.c.h.b16 %v227
        %v290 = vunpack.c.l.b16 %v228
        %v291 = vunpack.c.h.b16 %v228
        %v292 = vunpack.c.l.b16 %v229
        %v293 = vunpack.c.h.b16 %v229
        %v294 = vunpack.c.l.b16 %v230
        %v295 = vunpack.c.h.b16 %v230
        %v296 = vunpack.c.l.b16 %v231
        %v297 = vunpack.c.h.b16 %v231
        %v298 = vpack.c.b16 %v276, %v274
        %v299 = vpack.c.b16 %v277, %v275
        %v300 = vpack.c.b16 %v280, %v278
        %v301 = vpack.c.b16 %v281, %v279
        %v302 = vpack.c.b16 %v284, %v282
        %v303 = vpack.c.b16 %v285, %v283
        %v304 = vpack.c.b16 %v288, %v286
        %v305 = vpack.c.b16 %v289, %v287
        %v306 = vpack.c.b16 %v292, %v290
        %v307 = vpack.c.b16 %v293, %v291
        %v308 = vpack.c.b16 %v296, %v294
        %v309 = vpack.c.b16 %v297, %v295
        %vm322 = vcmask 785408
        %v324 = vsel %vm322, %v260, 0
        %v327 = vsel %vm322, %v261, 0
        %329 = vmatpush.bf16.msra.mxu0 0
        %330 = vmatpush.bf16.msra.mxu0 0
        %331 = vmatpush.bf16.msra.mxu0 %v308
        %332 = vmatpush.bf16.msra.mxu0 %v306
        %333 = vmatpush.bf16.msra.mxu0 %v304
        %334 = vmatpush.bf16.msra.mxu0 %v302
        %335 = vmatpush.bf16.msra.mxu0 %v300
        %336 = vmatpush.bf16.msra.mxu0 %v298
        %337 = vmatmul.bf16.gmra.mxu0 %v324
        %v338 = vpop.f32.mrf.mxu0
        %v339 = vadd.f32 %v235, %v338
        %v340 = vpop.f32.mrf.mxu0
        %v341 = vadd.f32 %v240, %v340
        %342 = vmatmul.bf16.gmra.mxu0 %v327
        %v343 = vpop.f32.mrf.mxu0
        %v344 = vadd.f32 %v245, %v343
        %v345 = vpop.f32.mrf.mxu0
        %v346 = vadd.f32 %v250, %v345
        %347 = vdwg.mxu0
        %348 = vmatpush.bf16.msra.mxu0 0
        %349 = vmatpush.bf16.msra.mxu0 0
        %350 = vmatpush.bf16.msra.mxu0 %v309
        %351 = vmatpush.bf16.msra.mxu0 %v307
        %352 = vmatpush.bf16.msra.mxu0 %v305
        %353 = vmatpush.bf16.msra.mxu0 %v303
        %354 = vmatpush.bf16.msra.mxu0 %v301
        %355 = vmatpush.bf16.msra.mxu0 %v299
        %356 = vmatmul.bf16.gmra.mxu0 %v324
        %v357 = vpop.f32.mrf.mxu0
        %v358 = vadd.f32 %v235, %v357
        %v359 = vpop.f32.mrf.mxu0
        %v360 = vadd.f32 %v240, %v359
        %361 = vmatmul.bf16.gmra.mxu0 %v327
        %v362 = vpop.f32.mrf.mxu0
        %v363 = vadd.f32 %v245, %v362
        %v364 = vpop.f32.mrf.mxu0
        %v365 = vadd.f32 %v250, %v364
        %366 = vdwg.mxu0
        %v367 = vpack.c.bf16 %v358, %v339
        %v368 = vpack.c.bf16 %v360, %v341
        %v369 = vpack.c.bf16 %v363, %v344
        %v370 = vpack.c.bf16 %v365, %v346
        %371 = vst [vmem:[%s208] sm:$0xff] %v367
        %372 = vst [vmem:[%s208 + $0x8] sm:$0xff] %v368
        %373 = vst [vmem:[%s208 + $0x10] sm:$0xff] %v369
        %374 = vst [vmem:[%s208 + $0x18] sm:$0xff] %v370
        %s375 = sand.u32 %s112, 1
        %s376 = scalar_lea.sflag [#allocation4], %s375
        %s377 = sand.u32 %s112, 1
        %s378 = smul.addr %s377, 32
        %s379 = scalar_lea.vmem [#allocation5], %s378
        // Predicated region
        $region37: #{tpu_custom_call.1} parent=31 // pred_check
          %p380 = pneg %p122
        $region38: #{tpu_custom_call.1} parent=31 // pred_check_branch
          %382 = sbr.rel (%p380) target = $region40
        $region39: #{tpu_custom_call.1} parent=31 // pred_region
          %s383 = smul.u32 2, %s25
          %385 = vsyncadd %s376, 0
          %s386 = smul.addr %s24, 8
          %s387 = sadd.s32 %s383, %s386
          %s388 = smul.addr %s387, 4
          %s389 = scalar_lea.hbm %s3, %s388
          %s390 = sshll.u32 %s379, 4
          %s391 = int_to_ptr.vmem [resolvable:$true] %s390
          %s392 = sshll.u32 %s389, 4
          %s393 = int_to_ptr.hbm [resolvable:$true] %s392
          %398 = dma.vmem_to_hbm [thread:$0]  %s391, 512, %s393, %s376, 128, 128, 8
        $region40: #{tpu_custom_call.1} parent=31 // pred_fallthru
          _
      $region32: #{tpu_custom_call.1} parent=5 // pred_fallthru
        _
      %p399 = scmp.le.s32.totalorder 2, %s15
      // Predicated region
      $region41: #{tpu_custom_call.1} parent=5 // pred_check
        %p400 = pneg %p399
      $region42: #{tpu_custom_call.1} parent=5 // pred_check_branch
        %402 = sbr.rel (%p400) target = $region44
      $region43: #{tpu_custom_call.1} parent=5 // pred_region
        %s403 = ssub.s32 %s15, 2
        // Predicated region
        $region45: #{tpu_custom_call.1} parent=43 // pred_check
          %p404 = pneg %p128
        $region46: #{tpu_custom_call.1} parent=43 // pred_check_branch
          %406 = sbr.rel (%p404) target = $region48
        $region47: #{tpu_custom_call.1} parent=43 // pred_region
          %s407 = sand.u32 %s113, 1
          %s408 = scalar_lea.sflag [#allocation4], %s407
          %s409 = sand.u32 %s113, 1
          %s410 = smul.addr %s409, 32
          %s411 = scalar_lea.vmem [#allocation5], %s410
          %413 = dma.done %s408, 512
        $region48: #{tpu_custom_call.1} parent=43 // pred_fallthru
          _
      $region44: #{tpu_custom_call.1} parent=5 // pred_fallthru
        _
    $region6: #{tpu_custom_call.1} parent=1 // loop_footer
      %s19 = sadd.s32 1, %s15
    $region7: #{tpu_custom_call.1} parent=1 // loop_footer_branch
      %14 = sbr.rel target = $region3
    $region8: #{tpu_custom_call.1} parent=1 // loop_exit
      _
    %414 = vsyncpa [#allocation3], 1
    %s415 = scalar_lea.sflag [#allocation3], 1
    %416 = vsyncpa %s415, 1
    %417 = vsyncpa [#allocation4], 1
    %s418 = scalar_lea.sflag [#allocation4], 1
    %419 = vsyncpa %s418, 1

</llo_original>
